<compile_context>
chip_gen: v5e
topology: v5e:2x2
jax: 0.10.0
libtpu: 0.0.40
codegen_flags: <defaults>
</compile_context>

<pallas_src>
import functools

import jax
import jax.numpy as jnp
from jax.experimental import pallas as pl
from jax.experimental.pallas import tpu as pltpu


def _round_up(a, b):
    return (a + b - 1) // b * b


def _coupling_kernel(n_layers, compute_dtype, x_ref, mask_ref, *rest):
    # rest layout: [s weights]*L, [t weights]*L, [s biases]*L, [t biases]*L, u, ld
    sw = rest[0:n_layers]
    tw = rest[n_layers:2 * n_layers]
    sb = rest[2 * n_layers:3 * n_layers]
    tb = rest[3 * n_layers:4 * n_layers]
    u_ref = rest[4 * n_layers]
    ld_ref = rest[4 * n_layers + 1]

    x = x_ref[...].astype(jnp.float32)      # (TB, Dp)
    m = mask_ref[...].astype(jnp.float32)   # (1, Dp)
    mx = x * m

    mx_c = mx.astype(compute_dtype)
    hs = jnp.dot(mx_c, sw[0][...], preferred_element_type=jnp.float32) + sb[0][...]
    ht = jnp.dot(mx_c, tw[0][...], preferred_element_type=jnp.float32) + tb[0][...]

    for i in range(1, n_layers):
        a_s = jnp.tanh(hs).astype(compute_dtype)          # EUP work only on the s net
        a_t = jnp.maximum(ht, 0.0).astype(compute_dtype)   # relu stays on the VPU
        hs = jnp.dot(a_s, sw[i][...], preferred_element_type=jnp.float32) + sb[i][...]
        ht = jnp.dot(a_t, tw[i][...], preferred_element_type=jnp.float32) + tb[i][...]

    s, t = hs, ht
    one_m = 1.0 - m
    u_ref[...] = (mx + one_m * (x - t) * jnp.exp(-s)).astype(u_ref.dtype)
    ld_ref[...] = (-one_m * s).astype(ld_ref.dtype)


def prepare_coupling_params(mask, s_weights, s_biases, t_weights, t_biases,
                            *, weight_dtype=jnp.float32):
    """One-time parameter packing (hoisted out of the per-call forward).

    - pads the feature dim D up to a multiple of 128 (lane-dense loads/stores),
    - reshapes biases to (1, N) rows (biases stay f32),
    - optionally casts weights to bf16 for the v6e/v7x MXU.
    Returns a pytree of arrays only (safe to close over / pass through jit).
    """
    D = s_weights[0].shape[0]
    Dp = _round_up(D, 128)

    def pad_first(w):   # (D, H) -> (Dp, H), zero rows
        return jnp.pad(w, ((0, Dp - D), (0, 0))) if Dp != D else w

    def pad_last_w(w):  # (H, D) -> (H, Dp), zero cols
        return jnp.pad(w, ((0, 0), (0, Dp - D))) if Dp != D else w

    def pad_last_b(b):  # (D,) -> (Dp,)
        return jnp.pad(b, (0, Dp - D)) if Dp != D else b

    s_w = [pad_first(s_weights[0])] + list(s_weights[1:-1]) + [pad_last_w(s_weights[-1])]
    t_w = [pad_first(t_weights[0])] + list(t_weights[1:-1]) + [pad_last_w(t_weights[-1])]
    s_w = tuple(w.astype(weight_dtype) for w in s_w)
    t_w = tuple(w.astype(weight_dtype) for w in t_w)
    s_b = tuple([b.reshape(1, -1).astype(jnp.float32) for b in s_biases[:-1]]
                + [pad_last_b(s_biases[-1]).reshape(1, -1).astype(jnp.float32)])
    t_b = tuple([b.reshape(1, -1).astype(jnp.float32) for b in t_biases[:-1]]
                + [pad_last_b(t_biases[-1]).reshape(1, -1).astype(jnp.float32)])
    mask_p = (jnp.pad(mask, (0, Dp - D)) if Dp != D else mask)
    mask_p = mask_p.reshape(1, Dp).astype(jnp.float32)
    return dict(mask=mask_p, s_w=s_w, t_w=t_w, s_b=s_b, t_b=t_b)


def linear_masked_coupling_forward(x, params, *, batch_tile=1024,
                                   vmem_tile_budget=40 * 1024 * 1024):
    """x: (B, D); params from prepare_coupling_params.
    Returns (u (B, D), log_abs_det_jacobian (B, D))."""
    B, D = x.shape
    s_w, t_w, s_b, t_b = params["s_w"], params["t_w"], params["s_b"], params["t_b"]
    mask = params["mask"]
    L = len(s_w)
    Dp = s_w[0].shape[0]
    H = s_w[0].shape[1]
    dt = x.dtype
    cdt = s_w[0].dtype

    # Lane-dense input: pad x columns to Dp (no-op when D % 128 == 0).
    x_in = jnp.pad(x, ((0, 0), (0, Dp - D))) if Dp != D else x

    # ---- batch-tile selection from the VMEM budget -------------------------
    w_bytes = (sum(int(w.size) * w.dtype.itemsize for w in (*s_w, *t_w))
               + sum(int(b.size) * 4 for b in (*s_b, *t_b))
               + int(mask.size) * 4)
    # Pipelined per-row bytes: x (2 bufs) + u, ld (2 bufs each) at f32 width Dp,
    # plus slack for the (TB, H)/(TB, Dp) in-kernel temporaries.
    per_row = 4 * Dp * 6 + 4 * 8 * max(2 * H, Dp)
    tb_cap = max(8, (vmem_tile_budget - w_bytes) // per_row)
    TB = min(batch_tile, tb_cap)
    if B > 8:
        # Guarantee >= 2 grid steps so ("parallel",) uses both v7x TensorCores.
        TB = min(TB, _round_up(pl.cdiv(B, 2), 8))
    TB = min(TB, _round_up(B, 8))
    TB = max(8, TB // 8 * 8)
    grid = pl.cdiv(B, TB)   # ragged trailing block: reads padded, writes clipped

    vmem_limit = int(min(64 * 1024 * 1024, w_bytes + TB * per_row + 8 * 1024 * 1024))

    def resident(arr):
        # Weights / biases / mask: constant index_map -> fetched once; single
        # buffer (no double-buffer VMEM waste).
        nd = arr.ndim
        return pl.BlockSpec(arr.shape, lambda i, _n=nd: (0,) * _n,
                            pipeline_mode=pl.Buffered(1))

    kernel = functools.partial(_coupling_kernel, L, cdt)

    u, ld = pl.pallas_call(
        kernel,
        out_shape=(jax.ShapeDtypeStruct((B, Dp), dt),
                   jax.ShapeDtypeStruct((B, Dp), dt)),
        grid_spec=pltpu.PrefetchScalarGridSpec(
            num_scalar_prefetch=0,
            grid=(grid,),
            in_specs=[pl.BlockSpec((TB, Dp), lambda i: (i, 0)),
                      resident(mask)]
                     + [resident(w) for w in (*s_w, *t_w)]
                     + [resident(b) for b in (*s_b, *t_b)],
            out_specs=[pl.BlockSpec((TB, Dp), lambda i: (i, 0)),
                       pl.BlockSpec((TB, Dp), lambda i: (i, 0))],
        ),
        compiler_params=pltpu.CompilerParams(
            dimension_semantics=("parallel",),
            vmem_limit_bytes=vmem_limit),
    )(x_in, mask, *s_w, *t_w, *s_b, *t_b)

    if Dp != D:
        u, ld = u[:, :D], ld[:, :D]
    return u, ld


def linear_masked_coupling_reference(x, mask, s_ws, s_bs, t_ws, t_bs):
    """Pure-JAX reference matching the PyTorch forward exactly (y=None)."""
    mx = x * mask
    hs = jnp.dot(mx, s_ws[0]) + s_bs[0]
    for w, b in zip(s_ws[1:], s_bs[1:]):
        hs = jnp.dot(jnp.tanh(hs), w) + b
    ht = jnp.dot(mx, t_ws[0]) + t_bs[0]
    for w, b in zip(t_ws[1:], t_bs[1:]):
        ht = jnp.dot(jnp.maximum(ht, 0.0), w) + b
    s, t = hs, ht
    u = mx + (1.0 - mask) * (x - t) * jnp.exp(-s)
    ld = -(1.0 - mask) * s
    return u, ld


if __name__ == "__main__":
    B, D, H, n_hidden = 20, 6, 32, 1
    L = n_hidden + 2

    key = jax.random.PRNGKey(0)
    kx, ks, kt = jax.random.split(key, 3)

    x = jax.random.normal(kx, (B, D), jnp.float32)
    mask = (jnp.arange(D) % 2).astype(jnp.float32)     # alternating RealNVP-style mask

    in_dims = [D] + [H] * (L - 1)
    out_dims = [H] * (L - 1) + [D]

    def init_net(k):
        ws, bs = [], []
        for i in range(L):
            k, k1, k2 = jax.random.split(k, 3)
            ws.append(0.2 * jax.random.normal(k1, (in_dims[i], out_dims[i]), jnp.float32))
            bs.append(0.2 * jax.random.normal(k2, (out_dims[i],), jnp.float32))
        return ws, bs

    s_ws, s_bs = init_net(ks)
    t_ws, t_bs = init_net(kt)

    # Parameter packing is hoisted out of the per-call forward (done once).
    params = prepare_coupling_params(mask, s_ws, s_bs, t_ws, t_bs)

    fwd = jax.jit(linear_masked_coupling_forward)
    u, ld = fwd(x, params)
    jax.block_until_ready((u, ld))

    u_ref, ld_ref = linear_masked_coupling_reference(x, mask, s_ws, s_bs, t_ws, t_bs)
    assert u.shape == (B, D) and ld.shape == (B, D)
    assert jnp.allclose(u, u_ref, atol=1e-4, rtol=1e-4), float(jnp.max(jnp.abs(u - u_ref)))
    assert jnp.allclose(ld, ld_ref, atol=1e-4, rtol=1e-4), float(jnp.max(jnp.abs(ld - ld_ref)))
    print("KERNEL_OK")
</pallas_src>

<mosaic_0001>
module attributes {stable_mosaic.version = 11 : i64} {
  func.func @_coupling_kernel(%arg0: i32, %arg1: memref<16x128xf32, #tpu.memory_space<vmem>>, %arg2: memref<1x128xf32, #tpu.memory_space<vmem>>, %arg3: memref<128x32xf32, #tpu.memory_space<vmem>>, %arg4: memref<32x32xf32, #tpu.memory_space<vmem>>, %arg5: memref<32x128xf32, #tpu.memory_space<vmem>>, %arg6: memref<128x32xf32, #tpu.memory_space<vmem>>, %arg7: memref<32x32xf32, #tpu.memory_space<vmem>>, %arg8: memref<32x128xf32, #tpu.memory_space<vmem>>, %arg9: memref<1x32xf32, #tpu.memory_space<vmem>>, %arg10: memref<1x32xf32, #tpu.memory_space<vmem>>, %arg11: memref<1x128xf32, #tpu.memory_space<vmem>>, %arg12: memref<1x32xf32, #tpu.memory_space<vmem>>, %arg13: memref<1x32xf32, #tpu.memory_space<vmem>>, %arg14: memref<1x128xf32, #tpu.memory_space<vmem>>, %arg15: memref<16x128xf32, #tpu.memory_space<vmem>>, %arg16: memref<16x128xf32, #tpu.memory_space<vmem>>) attributes {dimension_semantics = [#tpu.dimension_semantics<parallel>], iteration_bounds = array<i64: 2>, scalar_prefetch = 0 : i64, scratch_operands = 0 : i64, tpu.core_type = #tpu.core_type<tc>, window_params = [{transform_indices = @transform_0, window_bounds = array<i64: 16, 128>}, {pipeline_mode = #tpu.pipeline_mode<synchronous>, transform_indices = @transform_1, window_bounds = array<i64: 1, 128>}, {pipeline_mode = #tpu.pipeline_mode<synchronous>, transform_indices = @transform_2, window_bounds = array<i64: 128, 32>}, {pipeline_mode = #tpu.pipeline_mode<synchronous>, transform_indices = @transform_3, window_bounds = array<i64: 32, 32>}, {pipeline_mode = #tpu.pipeline_mode<synchronous>, transform_indices = @transform_4, window_bounds = array<i64: 32, 128>}, {pipeline_mode = #tpu.pipeline_mode<synchronous>, transform_indices = @transform_5, window_bounds = array<i64: 128, 32>}, {pipeline_mode = #tpu.pipeline_mode<synchronous>, transform_indices = @transform_6, window_bounds = array<i64: 32, 32>}, {pipeline_mode = #tpu.pipeline_mode<synchronous>, transform_indices = @transform_7, window_bounds = array<i64: 32, 128>}, {pipeline_mode = #tpu.pipeline_mode<synchronous>, transform_indices = @transform_8, window_bounds = array<i64: 1, 32>}, {pipeline_mode = #tpu.pipeline_mode<synchronous>, transform_indices = @transform_9, window_bounds = array<i64: 1, 32>}, {pipeline_mode = #tpu.pipeline_mode<synchronous>, transform_indices = @transform_10, window_bounds = array<i64: 1, 128>}, {pipeline_mode = #tpu.pipeline_mode<synchronous>, transform_indices = @transform_11, window_bounds = array<i64: 1, 32>}, {pipeline_mode = #tpu.pipeline_mode<synchronous>, transform_indices = @transform_12, window_bounds = array<i64: 1, 32>}, {pipeline_mode = #tpu.pipeline_mode<synchronous>, transform_indices = @transform_13, window_bounds = array<i64: 1, 128>}, {transform_indices = @transform_14, window_bounds = array<i64: 16, 128>}, {transform_indices = @transform_15, window_bounds = array<i64: 16, 128>}]} {
    %c0 = arith.constant 0 : index
    %c0_0 = arith.constant 0 : index
    %0 = vector.load %arg1[%c0, %c0_0] : memref<16x128xf32, #tpu.memory_space<vmem>>, vector<16x128xf32>
    %c0_1 = arith.constant 0 : index
    %c0_2 = arith.constant 0 : index
    %1 = vector.load %arg2[%c0_1, %c0_2] : memref<1x128xf32, #tpu.memory_space<vmem>>, vector<1x128xf32>
    %2 = vector.broadcast %1 : vector<1x128xf32> to vector<16x128xf32>
    %3 = arith.mulf %0, %2 : vector<16x128xf32>
    %c0_3 = arith.constant 0 : index
    %c0_4 = arith.constant 0 : index
    %4 = vector.load %arg3[%c0_3, %c0_4] : memref<128x32xf32, #tpu.memory_space<vmem>>, vector<128x32xf32>
    %cst = arith.constant dense<0.000000e+00> : vector<16x32xf32>
    %5 = tpu.matmul %3, %4, %cst {dimension_numbers = #tpu.dot_dimension_numbers<[1], [0], [0], [1], [0, 0, 1, 1], [], []>} : vector<16x128xf32>, vector<128x32xf32>, vector<16x32xf32> -> vector<16x32xf32>
    %c0_5 = arith.constant 0 : index
    %c0_6 = arith.constant 0 : index
    %6 = vector.load %arg9[%c0_5, %c0_6] : memref<1x32xf32, #tpu.memory_space<vmem>>, vector<1x32xf32>
    %7 = vector.broadcast %6 : vector<1x32xf32> to vector<16x32xf32>
    %8 = arith.addf %5, %7 : vector<16x32xf32>
    %c0_7 = arith.constant 0 : index
    %c0_8 = arith.constant 0 : index
    %9 = vector.load %arg6[%c0_7, %c0_8] : memref<128x32xf32, #tpu.memory_space<vmem>>, vector<128x32xf32>
    %cst_9 = arith.constant dense<0.000000e+00> : vector<16x32xf32>
    %10 = tpu.matmul %3, %9, %cst_9 {dimension_numbers = #tpu.dot_dimension_numbers<[1], [0], [0], [1], [0, 0, 1, 1], [], []>} : vector<16x128xf32>, vector<128x32xf32>, vector<16x32xf32> -> vector<16x32xf32>
    %c0_10 = arith.constant 0 : index
    %c0_11 = arith.constant 0 : index
    %11 = vector.load %arg12[%c0_10, %c0_11] : memref<1x32xf32, #tpu.memory_space<vmem>>, vector<1x32xf32>
    %12 = vector.broadcast %11 : vector<1x32xf32> to vector<16x32xf32>
    %13 = arith.addf %10, %12 : vector<16x32xf32>
    %14 = math.tanh %8 : vector<16x32xf32>
    %cst_12 = arith.constant 0.000000e+00 : f32
    %15 = vector.broadcast %cst_12 : f32 to vector<16x32xf32>
    %16 = arith.maximumf %13, %15 : vector<16x32xf32>
    %c0_13 = arith.constant 0 : index
    %c0_14 = arith.constant 0 : index
    %17 = vector.load %arg4[%c0_13, %c0_14] : memref<32x32xf32, #tpu.memory_space<vmem>>, vector<32x32xf32>
    %cst_15 = arith.constant dense<0.000000e+00> : vector<16x32xf32>
    %18 = tpu.matmul %14, %17, %cst_15 {dimension_numbers = #tpu.dot_dimension_numbers<[1], [0], [0], [1], [0, 0, 1, 1], [], []>} : vector<16x32xf32>, vector<32x32xf32>, vector<16x32xf32> -> vector<16x32xf32>
    %c0_16 = arith.constant 0 : index
    %c0_17 = arith.constant 0 : index
    %19 = vector.load %arg10[%c0_16, %c0_17] : memref<1x32xf32, #tpu.memory_space<vmem>>, vector<1x32xf32>
    %20 = vector.broadcast %19 : vector<1x32xf32> to vector<16x32xf32>
    %21 = arith.addf %18, %20 : vector<16x32xf32>
    %c0_18 = arith.constant 0 : index
    %c0_19 = arith.constant 0 : index
    %22 = vector.load %arg7[%c0_18, %c0_19] : memref<32x32xf32, #tpu.memory_space<vmem>>, vector<32x32xf32>
    %cst_20 = arith.constant dense<0.000000e+00> : vector<16x32xf32>
    %23 = tpu.matmul %16, %22, %cst_20 {dimension_numbers = #tpu.dot_dimension_numbers<[1], [0], [0], [1], [0, 0, 1, 1], [], []>} : vector<16x32xf32>, vector<32x32xf32>, vector<16x32xf32> -> vector<16x32xf32>
    %c0_21 = arith.constant 0 : index
    %c0_22 = arith.constant 0 : index
    %24 = vector.load %arg13[%c0_21, %c0_22] : memref<1x32xf32, #tpu.memory_space<vmem>>, vector<1x32xf32>
    %25 = vector.broadcast %24 : vector<1x32xf32> to vector<16x32xf32>
    %26 = arith.addf %23, %25 : vector<16x32xf32>
    %27 = math.tanh %21 : vector<16x32xf32>
    %cst_23 = arith.constant 0.000000e+00 : f32
    %28 = vector.broadcast %cst_23 : f32 to vector<16x32xf32>
    %29 = arith.maximumf %26, %28 : vector<16x32xf32>
    %c0_24 = arith.constant 0 : index
    %c0_25 = arith.constant 0 : index
    %30 = vector.load %arg5[%c0_24, %c0_25] : memref<32x128xf32, #tpu.memory_space<vmem>>, vector<32x128xf32>
    %cst_26 = arith.constant dense<0.000000e+00> : vector<16x128xf32>
    %31 = tpu.matmul %27, %30, %cst_26 {dimension_numbers = #tpu.dot_dimension_numbers<[1], [0], [0], [1], [0, 0, 1, 1], [], []>} : vector<16x32xf32>, vector<32x128xf32>, vector<16x128xf32> -> vector<16x128xf32>
    %c0_27 = arith.constant 0 : index
    %c0_28 = arith.constant 0 : index
    %32 = vector.load %arg11[%c0_27, %c0_28] : memref<1x128xf32, #tpu.memory_space<vmem>>, vector<1x128xf32>
    %33 = vector.broadcast %32 : vector<1x128xf32> to vector<16x128xf32>
    %34 = arith.addf %31, %33 : vector<16x128xf32>
    %c0_29 = arith.constant 0 : index
    %c0_30 = arith.constant 0 : index
    %35 = vector.load %arg8[%c0_29, %c0_30] : memref<32x128xf32, #tpu.memory_space<vmem>>, vector<32x128xf32>
    %cst_31 = arith.constant dense<0.000000e+00> : vector<16x128xf32>
    %36 = tpu.matmul %29, %35, %cst_31 {dimension_numbers = #tpu.dot_dimension_numbers<[1], [0], [0], [1], [0, 0, 1, 1], [], []>} : vector<16x32xf32>, vector<32x128xf32>, vector<16x128xf32> -> vector<16x128xf32>
    %c0_32 = arith.constant 0 : index
    %c0_33 = arith.constant 0 : index
    %37 = vector.load %arg14[%c0_32, %c0_33] : memref<1x128xf32, #tpu.memory_space<vmem>>, vector<1x128xf32>
    %38 = vector.broadcast %37 : vector<1x128xf32> to vector<16x128xf32>
    %39 = arith.addf %36, %38 : vector<16x128xf32>
    %cst_34 = arith.constant 1.000000e+00 : f32
    %40 = vector.broadcast %cst_34 : f32 to vector<1x128xf32>
    %41 = arith.subf %40, %1 : vector<1x128xf32>
    %42 = arith.subf %0, %39 : vector<16x128xf32>
    %43 = vector.broadcast %41 : vector<1x128xf32> to vector<16x128xf32>
    %44 = arith.mulf %43, %42 : vector<16x128xf32>
    %cst_35 = arith.constant 0.000000e+00 : f32
    %45 = vector.broadcast %cst_35 : f32 to vector<16x128xf32>
    %46 = arith.subf %45, %34 : vector<16x128xf32>
    %47 = math.exp %46 : vector<16x128xf32>
    %48 = arith.mulf %44, %47 : vector<16x128xf32>
    %49 = arith.addf %3, %48 : vector<16x128xf32>
    %c0_36 = arith.constant 0 : index
    %c0_37 = arith.constant 0 : index
    %50 = vector.load %arg15[%c0_36, %c0_37] : memref<16x128xf32, #tpu.memory_space<vmem>>, vector<16x128xf32>
    tpu.vector_store %arg15[%c0_36, %c0_37], %49 {strides = array<i32>} : memref<16x128xf32, #tpu.memory_space<vmem>>, vector<16x128xf32>,
    %cst_38 = arith.constant 0.000000e+00 : f32
    %51 = vector.broadcast %cst_38 : f32 to vector<1x128xf32>
    %52 = arith.subf %51, %41 : vector<1x128xf32>
    %53 = vector.broadcast %52 : vector<1x128xf32> to vector<16x128xf32>
    %54 = arith.mulf %53, %34 : vector<16x128xf32>
    %c0_39 = arith.constant 0 : index
    %c0_40 = arith.constant 0 : index
    %55 = vector.load %arg16[%c0_39, %c0_40] : memref<16x128xf32, #tpu.memory_space<vmem>>, vector<16x128xf32>
    tpu.vector_store %arg16[%c0_39, %c0_40], %54 {strides = array<i32>} : memref<16x128xf32, #tpu.memory_space<vmem>>, vector<16x128xf32>,
    return
  }
  func.func @transform_0(%arg0: i32) -> (i32, i32) {
    %c0_i32 = arith.constant 0 : i32
    %c0_i32_0 = arith.constant 0 : i32
    return %arg0, %c0_i32 : i32, i32
  }
  func.func @transform_1(%arg0: i32) -> (i32, i32) {
    %c0_i32 = arith.constant 0 : i32
    %c0_i32_0 = arith.constant 0 : i32
    %c0_i32_1 = arith.constant 0 : i32
    return %c0_i32, %c0_i32_0 : i32, i32
  }
  func.func @transform_2(%arg0: i32) -> (i32, i32) {
    %c0_i32 = arith.constant 0 : i32
    %c0_i32_0 = arith.constant 0 : i32
    %c0_i32_1 = arith.constant 0 : i32
    return %c0_i32, %c0_i32_0 : i32, i32
  }
  func.func @transform_3(%arg0: i32) -> (i32, i32) {
    %c0_i32 = arith.constant 0 : i32
    %c0_i32_0 = arith.constant 0 : i32
    %c0_i32_1 = arith.constant 0 : i32
    return %c0_i32, %c0_i32_0 : i32, i32
  }
  func.func @transform_4(%arg0: i32) -> (i32, i32) {
    %c0_i32 = arith.constant 0 : i32
    %c0_i32_0 = arith.constant 0 : i32
    %c0_i32_1 = arith.constant 0 : i32
    return %c0_i32, %c0_i32_0 : i32, i32
  }
  func.func @transform_5(%arg0: i32) -> (i32, i32) {
    %c0_i32 = arith.constant 0 : i32
    %c0_i32_0 = arith.constant 0 : i32
    %c0_i32_1 = arith.constant 0 : i32
    return %c0_i32, %c0_i32_0 : i32, i32
  }
  func.func @transform_6(%arg0: i32) -> (i32, i32) {
    %c0_i32 = arith.constant 0 : i32
    %c0_i32_0 = arith.constant 0 : i32
    %c0_i32_1 = arith.constant 0 : i32
    return %c0_i32, %c0_i32_0 : i32, i32
  }
  func.func @transform_7(%arg0: i32) -> (i32, i32) {
    %c0_i32 = arith.constant 0 : i32
    %c0_i32_0 = arith.constant 0 : i32
    %c0_i32_1 = arith.constant 0 : i32
    return %c0_i32, %c0_i32_0 : i32, i32
  }
  func.func @transform_8(%arg0: i32) -> (i32, i32) {
    %c0_i32 = arith.constant 0 : i32
    %c0_i32_0 = arith.constant 0 : i32
    %c0_i32_1 = arith.constant 0 : i32
    return %c0_i32, %c0_i32_0 : i32, i32
  }
  func.func @transform_9(%arg0: i32) -> (i32, i32) {
    %c0_i32 = arith.constant 0 : i32
    %c0_i32_0 = arith.constant 0 : i32
    %c0_i32_1 = arith.constant 0 : i32
    return %c0_i32, %c0_i32_0 : i32, i32
  }
  func.func @transform_10(%arg0: i32) -> (i32, i32) {
    %c0_i32 = arith.constant 0 : i32
    %c0_i32_0 = arith.constant 0 : i32
    %c0_i32_1 = arith.constant 0 : i32
    return %c0_i32, %c0_i32_0 : i32, i32
  }
  func.func @transform_11(%arg0: i32) -> (i32, i32) {
    %c0_i32 = arith.constant 0 : i32
    %c0_i32_0 = arith.constant 0 : i32
    %c0_i32_1 = arith.constant 0 : i32
    return %c0_i32, %c0_i32_0 : i32, i32
  }
  func.func @transform_12(%arg0: i32) -> (i32, i32) {
    %c0_i32 = arith.constant 0 : i32
    %c0_i32_0 = arith.constant 0 : i32
    %c0_i32_1 = arith.constant 0 : i32
    return %c0_i32, %c0_i32_0 : i32, i32
  }
  func.func @transform_13(%arg0: i32) -> (i32, i32) {
    %c0_i32 = arith.constant 0 : i32
    %c0_i32_0 = arith.constant 0 : i32
    %c0_i32_1 = arith.constant 0 : i32
    return %c0_i32, %c0_i32_0 : i32, i32
  }
  func.func @transform_14(%arg0: i32) -> (i32, i32) {
    %c0_i32 = arith.constant 0 : i32
    %c0_i32_0 = arith.constant 0 : i32
    return %arg0, %c0_i32 : i32, i32
  }
  func.func @transform_15(%arg0: i32) -> (i32, i32) {
    %c0_i32 = arith.constant 0 : i32
    %c0_i32_0 = arith.constant 0 : i32
    return %arg0, %c0_i32 : i32, i32
  }
}

</mosaic_0001>

<llo_original>
// kernel: linear_masked_coupling_forward.1
$region0: #{linear_masked_coupling_forward.1}
  #allocation0 [shape = 'u32[]', space=smem, size = 0x4, offset = 0x4, fixed_abs, tag = 'smem constant byte address 0x4 - core index']
  #allocation1 [shape = 'u32[72,128]{1,0:T(1,128)}', space=vmem, size = 0x9000, scoped, tag = 'internal scratch']
  %s0 = inlined_call_operand.vmem [shape: f32[20,128], index: 0, kind: input, shape index: {}]
  %s1 = inlined_call_operand.vmem [shape: f32[1,128], index: 1, kind: input, shape index: {}]
  %s2 = inlined_call_operand.vmem [shape: f32[128,32], index: 2, kind: input, shape index: {}]
  %s3 = inlined_call_operand.vmem [shape: f32[32,32], index: 3, kind: input, shape index: {}]
  %s4 = inlined_call_operand.vmem [shape: f32[32,128], index: 4, kind: input, shape index: {}]
  %s5 = inlined_call_operand.vmem [shape: f32[128,32], index: 5, kind: input, shape index: {}]
  %s6 = inlined_call_operand.vmem [shape: f32[32,32], index: 6, kind: input, shape index: {}]
  %s7 = inlined_call_operand.vmem [shape: f32[32,128], index: 7, kind: input, shape index: {}]
  %s8 = inlined_call_operand.vmem [shape: f32[1,32], index: 8, kind: input, shape index: {}]
  %s9 = inlined_call_operand.vmem [shape: f32[1,32], index: 9, kind: input, shape index: {}]
  %s10 = inlined_call_operand.vmem [shape: f32[1,128], index: 10, kind: input, shape index: {}]
  %s11 = inlined_call_operand.vmem [shape: f32[1,32], index: 11, kind: input, shape index: {}]
  %s12 = inlined_call_operand.vmem [shape: f32[1,32], index: 12, kind: input, shape index: {}]
  %s13 = inlined_call_operand.vmem [shape: f32[1,128], index: 13, kind: input, shape index: {}]
  %s14 = inlined_call_operand.vmem [shape: f32[20,128], index: 14, kind: output, shape index: {0}]
  %s15 = inlined_call_operand.vmem [shape: f32[20,128], index: 15, kind: output, shape index: {1}]
  %16 = xla_tuple %s14, %s15
  %s17 = sld [smem:[#allocation0]]
  $region193: #{linear_masked_coupling_forward.1} parent=0
    _
  %s19 = ssub.s32 1, %s17
  %s20 = scalar_select 0, %s19, %s17
  $region1: #{linear_masked_coupling_forward.1} parent=0
    #allocation2 [shape = 'u8[16384]{0}', space=vmem, size = 0x4000, scoped, tag = 'output window, operand 0']
    #allocation3 [shape = 'u8[16384]{0}', space=vmem, size = 0x4000, scoped, tag = 'output window, operand 1']
    loop: start=0, step=1, limit=4
    $region2: #{linear_masked_coupling_forward.1} parent=1 // loop_pre_header
      _
    $region3: #{linear_masked_coupling_forward.1} parent=1 // loop_header
      %s22 = sphi 0, %s26
      %p23 = scmp.ge.s32.totalorder %s22, 4
      %s32 = sphi 0, %s34
      %s35 = sphi 0, %s32
      %s36 = sphi 0, %s35
      %s52 = sphi 0, %s36
      %s56 = sphi 0, %s56
      %s58 = sphi 0, %s56
      %s59 = sphi 0, %s58
      %s73 = sphi 0, %s59
      %s77 = sphi 0, %s77
      %s79 = sphi 0, %s77
      %s80 = sphi 0, %s79
      %s94 = sphi 0, %s80
      %s98 = sphi 0, %s98
      %s100 = sphi 0, %s98
      %s101 = sphi 0, %s100
      %s115 = sphi 0, %s101
      %s119 = sphi 0, %s119
      %s121 = sphi 0, %s119
      %s122 = sphi 0, %s121
      %s136 = sphi 0, %s122
      %s140 = sphi 0, %s140
      %s142 = sphi 0, %s140
      %s143 = sphi 0, %s142
      %s157 = sphi 0, %s143
      %s161 = sphi 0, %s161
      %s163 = sphi 0, %s161
      %s164 = sphi 0, %s163
      %s178 = sphi 0, %s164
      %s182 = sphi 0, %s182
      %s184 = sphi 0, %s182
      %s185 = sphi 0, %s184
      %s199 = sphi 0, %s185
      %s203 = sphi 0, %s203
      %s205 = sphi 0, %s203
      %s206 = sphi 0, %s205
      %s220 = sphi 0, %s206
      %s224 = sphi 0, %s224
      %s226 = sphi 0, %s224
      %s227 = sphi 0, %s226
      %s241 = sphi 0, %s227
      %s245 = sphi 0, %s245
      %s247 = sphi 0, %s245
      %s248 = sphi 0, %s247
      %s262 = sphi 0, %s248
      %s266 = sphi 0, %s266
      %s268 = sphi 0, %s266
      %s269 = sphi 0, %s268
      %s283 = sphi 0, %s269
      %s287 = sphi 0, %s287
      %s289 = sphi 0, %s287
      %s290 = sphi 0, %s289
      %s304 = sphi 0, %s290
      %s308 = sphi 0, %s308
      %s310 = sphi 0, %s308
      %s311 = sphi 0, %s310
      %s325 = sphi 0, %s311
      %s331 = sphi 0, %s333
      %s334 = sphi 0, %s331
      %s335 = sphi 0, %s334
      %s351 = sphi 0, %s335
      %s357 = sphi 0, %s359
      %s360 = sphi 0, %s357
      %s361 = sphi 0, %s360
      %s377 = sphi 0, %s361
    $region4: #{linear_masked_coupling_forward.1} parent=1 // loop_header_branch
      %25 = sbr.rel (%p23) target = $region8
    $region5: #{linear_masked_coupling_forward.1} parent=1 // loop_body
      %s27 = ssub.s32 %s22, 1
      %s28 = ssub.s32 %s22, 2
      %s29 = sadd.s32 %s22, 1
      %s30 = ssub.s32 %s22, %s29
      %p31 = scmp.eq.s32.totalorder %s30, 0
      %s33 = sadd.s32 %s32, 1
      %s34 = scalar_select %p31, %s32, %s33
      %p37 = pneg %p31
      %p38 = scmp.eq.s32.totalorder %s22, 1
      %p39 = por %p37, %p38
      %p40 = scmp.ne.s32.totalorder %s32, %s35
      %p41 = scmp.eq.s32.totalorder %s22, 0
      %p42 = por %p40, %p41
      %p43 = scmp.ne.s32.totalorder %s32, %s35
      %p44 = scmp.eq.s32.totalorder %s27, 1
      %p45 = por %p43, %p44
      %p46 = scmp.ne.s32.totalorder %s35, %s36
      %p47 = scmp.eq.s32.totalorder %s27, 0
      %p48 = por %p46, %p47
      %p49 = scmp.ne.s32.totalorder %s35, %s36
      %p50 = scmp.eq.s32.totalorder %s28, 1
      %p51 = por %p49, %p50
      %p53 = scmp.ne.s32.totalorder %s36, %s52
      %p54 = scmp.eq.s32.totalorder %s28, 0
      %p55 = por %p53, %p54
      %s57 = sadd.s32 %s56, 1
      %p60 = scmp.eq.s32.totalorder %s22, 1
      %p61 = scmp.ne.s32.totalorder %s56, %s58
      %p62 = scmp.eq.s32.totalorder %s22, 0
      %p63 = por %p61, %p62
      %p64 = scmp.ne.s32.totalorder %s56, %s58
      %p65 = scmp.eq.s32.totalorder %s27, 1
      %p66 = por %p64, %p65
      %p67 = scmp.ne.s32.totalorder %s58, %s59
      %p68 = scmp.eq.s32.totalorder %s27, 0
      %p69 = por %p67, %p68
      %p70 = scmp.ne.s32.totalorder %s58, %s59
      %p71 = scmp.eq.s32.totalorder %s28, 1
      %p72 = por %p70, %p71
      %p74 = scmp.ne.s32.totalorder %s59, %s73
      %p75 = scmp.eq.s32.totalorder %s28, 0
      %p76 = por %p74, %p75
      %s78 = sadd.s32 %s77, 1
      %p81 = scmp.eq.s32.totalorder %s22, 1
      %p82 = scmp.ne.s32.totalorder %s77, %s79
      %p83 = scmp.eq.s32.totalorder %s22, 0
      %p84 = por %p82, %p83
      %p85 = scmp.ne.s32.totalorder %s77, %s79
      %p86 = scmp.eq.s32.totalorder %s27, 1
      %p87 = por %p85, %p86
      %p88 = scmp.ne.s32.totalorder %s79, %s80
      %p89 = scmp.eq.s32.totalorder %s27, 0
      %p90 = por %p88, %p89
      %p91 = scmp.ne.s32.totalorder %s79, %s80
      %p92 = scmp.eq.s32.totalorder %s28, 1
      %p93 = por %p91, %p92
      %p95 = scmp.ne.s32.totalorder %s80, %s94
      %p96 = scmp.eq.s32.totalorder %s28, 0
      %p97 = por %p95, %p96
      %s99 = sadd.s32 %s98, 1
      %p102 = scmp.eq.s32.totalorder %s22, 1
      %p103 = scmp.ne.s32.totalorder %s98, %s100
      %p104 = scmp.eq.s32.totalorder %s22, 0
      %p105 = por %p103, %p104
      %p106 = scmp.ne.s32.totalorder %s98, %s100
      %p107 = scmp.eq.s32.totalorder %s27, 1
      %p108 = por %p106, %p107
      %p109 = scmp.ne.s32.totalorder %s100, %s101
      %p110 = scmp.eq.s32.totalorder %s27, 0
      %p111 = por %p109, %p110
      %p112 = scmp.ne.s32.totalorder %s100, %s101
      %p113 = scmp.eq.s32.totalorder %s28, 1
      %p114 = por %p112, %p113
      %p116 = scmp.ne.s32.totalorder %s101, %s115
      %p117 = scmp.eq.s32.totalorder %s28, 0
      %p118 = por %p116, %p117
      %s120 = sadd.s32 %s119, 1
      %p123 = scmp.eq.s32.totalorder %s22, 1
      %p124 = scmp.ne.s32.totalorder %s119, %s121
      %p125 = scmp.eq.s32.totalorder %s22, 0
      %p126 = por %p124, %p125
      %p127 = scmp.ne.s32.totalorder %s119, %s121
      %p128 = scmp.eq.s32.totalorder %s27, 1
      %p129 = por %p127, %p128
      %p130 = scmp.ne.s32.totalorder %s121, %s122
      %p131 = scmp.eq.s32.totalorder %s27, 0
      %p132 = por %p130, %p131
      %p133 = scmp.ne.s32.totalorder %s121, %s122
      %p134 = scmp.eq.s32.totalorder %s28, 1
      %p135 = por %p133, %p134
      %p137 = scmp.ne.s32.totalorder %s122, %s136
      %p138 = scmp.eq.s32.totalorder %s28, 0
      %p139 = por %p137, %p138
      %s141 = sadd.s32 %s140, 1
      %p144 = scmp.eq.s32.totalorder %s22, 1
      %p145 = scmp.ne.s32.totalorder %s140, %s142
      %p146 = scmp.eq.s32.totalorder %s22, 0
      %p147 = por %p145, %p146
      %p148 = scmp.ne.s32.totalorder %s140, %s142
      %p149 = scmp.eq.s32.totalorder %s27, 1
      %p150 = por %p148, %p149
      %p151 = scmp.ne.s32.totalorder %s142, %s143
      %p152 = scmp.eq.s32.totalorder %s27, 0
      %p153 = por %p151, %p152
      %p154 = scmp.ne.s32.totalorder %s142, %s143
      %p155 = scmp.eq.s32.totalorder %s28, 1
      %p156 = por %p154, %p155
      %p158 = scmp.ne.s32.totalorder %s143, %s157
      %p159 = scmp.eq.s32.totalorder %s28, 0
      %p160 = por %p158, %p159
      %s162 = sadd.s32 %s161, 1
      %p165 = scmp.eq.s32.totalorder %s22, 1
      %p166 = scmp.ne.s32.totalorder %s161, %s163
      %p167 = scmp.eq.s32.totalorder %s22, 0
      %p168 = por %p166, %p167
      %p169 = scmp.ne.s32.totalorder %s161, %s163
      %p170 = scmp.eq.s32.totalorder %s27, 1
      %p171 = por %p169, %p170
      %p172 = scmp.ne.s32.totalorder %s163, %s164
      %p173 = scmp.eq.s32.totalorder %s27, 0
      %p174 = por %p172, %p173
      %p175 = scmp.ne.s32.totalorder %s163, %s164
      %p176 = scmp.eq.s32.totalorder %s28, 1
      %p177 = por %p175, %p176
      %p179 = scmp.ne.s32.totalorder %s164, %s178
      %p180 = scmp.eq.s32.totalorder %s28, 0
      %p181 = por %p179, %p180
      %s183 = sadd.s32 %s182, 1
      %p186 = scmp.eq.s32.totalorder %s22, 1
      %p187 = scmp.ne.s32.totalorder %s182, %s184
      %p188 = scmp.eq.s32.totalorder %s22, 0
      %p189 = por %p187, %p188
      %p190 = scmp.ne.s32.totalorder %s182, %s184
      %p191 = scmp.eq.s32.totalorder %s27, 1
      %p192 = por %p190, %p191
      %p193 = scmp.ne.s32.totalorder %s184, %s185
      %p194 = scmp.eq.s32.totalorder %s27, 0
      %p195 = por %p193, %p194
      %p196 = scmp.ne.s32.totalorder %s184, %s185
      %p197 = scmp.eq.s32.totalorder %s28, 1
      %p198 = por %p196, %p197
      %p200 = scmp.ne.s32.totalorder %s185, %s199
      %p201 = scmp.eq.s32.totalorder %s28, 0
      %p202 = por %p200, %p201
      %s204 = sadd.s32 %s203, 1
      %p207 = scmp.eq.s32.totalorder %s22, 1
      %p208 = scmp.ne.s32.totalorder %s203, %s205
      %p209 = scmp.eq.s32.totalorder %s22, 0
      %p210 = por %p208, %p209
      %p211 = scmp.ne.s32.totalorder %s203, %s205
      %p212 = scmp.eq.s32.totalorder %s27, 1
      %p213 = por %p211, %p212
      %p214 = scmp.ne.s32.totalorder %s205, %s206
      %p215 = scmp.eq.s32.totalorder %s27, 0
      %p216 = por %p214, %p215
      %p217 = scmp.ne.s32.totalorder %s205, %s206
      %p218 = scmp.eq.s32.totalorder %s28, 1
      %p219 = por %p217, %p218
      %p221 = scmp.ne.s32.totalorder %s206, %s220
      %p222 = scmp.eq.s32.totalorder %s28, 0
      %p223 = por %p221, %p222
      %s225 = sadd.s32 %s224, 1
      %p228 = scmp.eq.s32.totalorder %s22, 1
      %p229 = scmp.ne.s32.totalorder %s224, %s226
      %p230 = scmp.eq.s32.totalorder %s22, 0
      %p231 = por %p229, %p230
      %p232 = scmp.ne.s32.totalorder %s224, %s226
      %p233 = scmp.eq.s32.totalorder %s27, 1
      %p234 = por %p232, %p233
      %p235 = scmp.ne.s32.totalorder %s226, %s227
      %p236 = scmp.eq.s32.totalorder %s27, 0
      %p237 = por %p235, %p236
      %p238 = scmp.ne.s32.totalorder %s226, %s227
      %p239 = scmp.eq.s32.totalorder %s28, 1
      %p240 = por %p238, %p239
      %p242 = scmp.ne.s32.totalorder %s227, %s241
      %p243 = scmp.eq.s32.totalorder %s28, 0
      %p244 = por %p242, %p243
      %s246 = sadd.s32 %s245, 1
      %p249 = scmp.eq.s32.totalorder %s22, 1
      %p250 = scmp.ne.s32.totalorder %s245, %s247
      %p251 = scmp.eq.s32.totalorder %s22, 0
      %p252 = por %p250, %p251
      %p253 = scmp.ne.s32.totalorder %s245, %s247
      %p254 = scmp.eq.s32.totalorder %s27, 1
      %p255 = por %p253, %p254
      %p256 = scmp.ne.s32.totalorder %s247, %s248
      %p257 = scmp.eq.s32.totalorder %s27, 0
      %p258 = por %p256, %p257
      %p259 = scmp.ne.s32.totalorder %s247, %s248
      %p260 = scmp.eq.s32.totalorder %s28, 1
      %p261 = por %p259, %p260
      %p263 = scmp.ne.s32.totalorder %s248, %s262
      %p264 = scmp.eq.s32.totalorder %s28, 0
      %p265 = por %p263, %p264
      %s267 = sadd.s32 %s266, 1
      %p270 = scmp.eq.s32.totalorder %s22, 1
      %p271 = scmp.ne.s32.totalorder %s266, %s268
      %p272 = scmp.eq.s32.totalorder %s22, 0
      %p273 = por %p271, %p272
      %p274 = scmp.ne.s32.totalorder %s266, %s268
      %p275 = scmp.eq.s32.totalorder %s27, 1
      %p276 = por %p274, %p275
      %p277 = scmp.ne.s32.totalorder %s268, %s269
      %p278 = scmp.eq.s32.totalorder %s27, 0
      %p279 = por %p277, %p278
      %p280 = scmp.ne.s32.totalorder %s268, %s269
      %p281 = scmp.eq.s32.totalorder %s28, 1
      %p282 = por %p280, %p281
      %p284 = scmp.ne.s32.totalorder %s269, %s283
      %p285 = scmp.eq.s32.totalorder %s28, 0
      %p286 = por %p284, %p285
      %s288 = sadd.s32 %s287, 1
      %p291 = scmp.eq.s32.totalorder %s22, 1
      %p292 = scmp.ne.s32.totalorder %s287, %s289
      %p293 = scmp.eq.s32.totalorder %s22, 0
      %p294 = por %p292, %p293
      %p295 = scmp.ne.s32.totalorder %s287, %s289
      %p296 = scmp.eq.s32.totalorder %s27, 1
      %p297 = por %p295, %p296
      %p298 = scmp.ne.s32.totalorder %s289, %s290
      %p299 = scmp.eq.s32.totalorder %s27, 0
      %p300 = por %p298, %p299
      %p301 = scmp.ne.s32.totalorder %s289, %s290
      %p302 = scmp.eq.s32.totalorder %s28, 1
      %p303 = por %p301, %p302
      %p305 = scmp.ne.s32.totalorder %s290, %s304
      %p306 = scmp.eq.s32.totalorder %s28, 0
      %p307 = por %p305, %p306
      %s309 = sadd.s32 %s308, 1
      %p312 = scmp.eq.s32.totalorder %s22, 1
      %p313 = scmp.ne.s32.totalorder %s308, %s310
      %p314 = scmp.eq.s32.totalorder %s22, 0
      %p315 = por %p313, %p314
      %p316 = scmp.ne.s32.totalorder %s308, %s310
      %p317 = scmp.eq.s32.totalorder %s27, 1
      %p318 = por %p316, %p317
      %p319 = scmp.ne.s32.totalorder %s310, %s311
      %p320 = scmp.eq.s32.totalorder %s27, 0
      %p321 = por %p319, %p320
      %p322 = scmp.ne.s32.totalorder %s310, %s311
      %p323 = scmp.eq.s32.totalorder %s28, 1
      %p324 = por %p322, %p323
      %p326 = scmp.ne.s32.totalorder %s311, %s325
      %p327 = scmp.eq.s32.totalorder %s28, 0
      %p328 = por %p326, %p327
      %s329 = ssub.s32 %s22, %s29
      %p330 = scmp.eq.s32.totalorder %s329, 0
      %s332 = sadd.s32 %s331, 1
      %s333 = scalar_select %p330, %s331, %s332
      %p336 = pneg %p330
      %p337 = scmp.eq.s32.totalorder %s22, 1
      %p338 = por %p336, %p337
      %p339 = scmp.ne.s32.totalorder %s331, %s334
      %p340 = scmp.eq.s32.totalorder %s22, 0
      %p341 = por %p339, %p340
      %p342 = scmp.ne.s32.totalorder %s331, %s334
      %p343 = scmp.eq.s32.totalorder %s27, 1
      %p344 = por %p342, %p343
      %p345 = scmp.ne.s32.totalorder %s334, %s335
      %p346 = scmp.eq.s32.totalorder %s27, 0
      %p347 = por %p345, %p346
      %p348 = scmp.ne.s32.totalorder %s334, %s335
      %p349 = scmp.eq.s32.totalorder %s28, 1
      %p350 = por %p348, %p349
      %p352 = scmp.ne.s32.totalorder %s335, %s351
      %p353 = scmp.eq.s32.totalorder %s28, 0
      %p354 = por %p352, %p353
      %s355 = ssub.s32 %s22, %s29
      %p356 = scmp.eq.s32.totalorder %s355, 0
      %s358 = sadd.s32 %s357, 1
      %s359 = scalar_select %p356, %s357, %s358
      %p362 = pneg %p356
      %p363 = scmp.eq.s32.totalorder %s22, 1
      %p364 = por %p362, %p363
      %p365 = scmp.ne.s32.totalorder %s357, %s360
      %p366 = scmp.eq.s32.totalorder %s22, 0
      %p367 = por %p365, %p366
      %p368 = scmp.ne.s32.totalorder %s357, %s360
      %p369 = scmp.eq.s32.totalorder %s27, 1
      %p370 = por %p368, %p369
      %p371 = scmp.ne.s32.totalorder %s360, %s361
      %p372 = scmp.eq.s32.totalorder %s27, 0
      %p373 = por %p371, %p372
      %p374 = scmp.ne.s32.totalorder %s360, %s361
      %p375 = scmp.eq.s32.totalorder %s28, 1
      %p376 = por %p374, %p375
      %p378 = scmp.ne.s32.totalorder %s361, %s377
      %p379 = scmp.eq.s32.totalorder %s28, 0
      %p380 = por %p378, %p379
      %p381 = scmp.le.s32.totalorder 1, %s22
      %p382 = scmp.lt.s32.totalorder %s22, 3
      %p383 = pnand %p381, %p382
      %p384 = pneg %p383
      // Predicated region
      $region9: #{linear_masked_coupling_forward.1} parent=5 // pred_check
        _
      $region10: #{linear_masked_coupling_forward.1} parent=5 // pred_check_branch
        %386 = sbr.rel (%p383) target = $region12
      $region11: #{linear_masked_coupling_forward.1} parent=5 // pred_region
        %s387 = ssub.s32 %s22, 1
        // Predicated region
        $region13: #{linear_masked_coupling_forward.1} parent=11 // pred_check
          %p388 = pneg %p69
        $region14: #{linear_masked_coupling_forward.1} parent=11 // pred_check_branch
          %390 = sbr.rel (%p388) target = $region16
        $region15: #{linear_masked_coupling_forward.1} parent=11 // pred_region
          _
        $region16: #{linear_masked_coupling_forward.1} parent=11 // pred_fallthru
          _
        // Predicated region
        $region17: #{linear_masked_coupling_forward.1} parent=11 // pred_check
          %p391 = pneg %p90
        $region18: #{linear_masked_coupling_forward.1} parent=11 // pred_check_branch
          %393 = sbr.rel (%p391) target = $region20
        $region19: #{linear_masked_coupling_forward.1} parent=11 // pred_region
          _
        $region20: #{linear_masked_coupling_forward.1} parent=11 // pred_fallthru
          _
        // Predicated region
        $region21: #{linear_masked_coupling_forward.1} parent=11 // pred_check
          %p394 = pneg %p111
        $region22: #{linear_masked_coupling_forward.1} parent=11 // pred_check_branch
          %396 = sbr.rel (%p394) target = $region24
        $region23: #{linear_masked_coupling_forward.1} parent=11 // pred_region
          _
        $region24: #{linear_masked_coupling_forward.1} parent=11 // pred_fallthru
          _
        // Predicated region
        $region25: #{linear_masked_coupling_forward.1} parent=11 // pred_check
          %p397 = pneg %p132
        $region26: #{linear_masked_coupling_forward.1} parent=11 // pred_check_branch
          %399 = sbr.rel (%p397) target = $region28
        $region27: #{linear_masked_coupling_forward.1} parent=11 // pred_region
          _
        $region28: #{linear_masked_coupling_forward.1} parent=11 // pred_fallthru
          _
        // Predicated region
        $region29: #{linear_masked_coupling_forward.1} parent=11 // pred_check
          %p400 = pneg %p153
        $region30: #{linear_masked_coupling_forward.1} parent=11 // pred_check_branch
          %402 = sbr.rel (%p400) target = $region32
        $region31: #{linear_masked_coupling_forward.1} parent=11 // pred_region
          _
        $region32: #{linear_masked_coupling_forward.1} parent=11 // pred_fallthru
          _
        // Predicated region
        $region33: #{linear_masked_coupling_forward.1} parent=11 // pred_check
          %p403 = pneg %p174
        $region34: #{linear_masked_coupling_forward.1} parent=11 // pred_check_branch
          %405 = sbr.rel (%p403) target = $region36
        $region35: #{linear_masked_coupling_forward.1} parent=11 // pred_region
          _
        $region36: #{linear_masked_coupling_forward.1} parent=11 // pred_fallthru
          _
        // Predicated region
        $region37: #{linear_masked_coupling_forward.1} parent=11 // pred_check
          %p406 = pneg %p195
        $region38: #{linear_masked_coupling_forward.1} parent=11 // pred_check_branch
          %408 = sbr.rel (%p406) target = $region40
        $region39: #{linear_masked_coupling_forward.1} parent=11 // pred_region
          _
        $region40: #{linear_masked_coupling_forward.1} parent=11 // pred_fallthru
          _
        // Predicated region
        $region41: #{linear_masked_coupling_forward.1} parent=11 // pred_check
          %p409 = pneg %p216
        $region42: #{linear_masked_coupling_forward.1} parent=11 // pred_check_branch
          %411 = sbr.rel (%p409) target = $region44
        $region43: #{linear_masked_coupling_forward.1} parent=11 // pred_region
          _
        $region44: #{linear_masked_coupling_forward.1} parent=11 // pred_fallthru
          _
        // Predicated region
        $region45: #{linear_masked_coupling_forward.1} parent=11 // pred_check
          %p412 = pneg %p237
        $region46: #{linear_masked_coupling_forward.1} parent=11 // pred_check_branch
          %414 = sbr.rel (%p412) target = $region48
        $region47: #{linear_masked_coupling_forward.1} parent=11 // pred_region
          _
        $region48: #{linear_masked_coupling_forward.1} parent=11 // pred_fallthru
          _
        // Predicated region
        $region49: #{linear_masked_coupling_forward.1} parent=11 // pred_check
          %p415 = pneg %p258
        $region50: #{linear_masked_coupling_forward.1} parent=11 // pred_check_branch
          %417 = sbr.rel (%p415) target = $region52
        $region51: #{linear_masked_coupling_forward.1} parent=11 // pred_region
          _
        $region52: #{linear_masked_coupling_forward.1} parent=11 // pred_fallthru
          _
        // Predicated region
        $region53: #{linear_masked_coupling_forward.1} parent=11 // pred_check
          %p418 = pneg %p279
        $region54: #{linear_masked_coupling_forward.1} parent=11 // pred_check_branch
          %420 = sbr.rel (%p418) target = $region56
        $region55: #{linear_masked_coupling_forward.1} parent=11 // pred_region
          _
        $region56: #{linear_masked_coupling_forward.1} parent=11 // pred_fallthru
          _
        // Predicated region
        $region57: #{linear_masked_coupling_forward.1} parent=11 // pred_check
          %p421 = pneg %p300
        $region58: #{linear_masked_coupling_forward.1} parent=11 // pred_check_branch
          %423 = sbr.rel (%p421) target = $region60
        $region59: #{linear_masked_coupling_forward.1} parent=11 // pred_region
          _
        $region60: #{linear_masked_coupling_forward.1} parent=11 // pred_fallthru
          _
        // Predicated region
        $region61: #{linear_masked_coupling_forward.1} parent=11 // pred_check
          %p424 = pneg %p321
        $region62: #{linear_masked_coupling_forward.1} parent=11 // pred_check_branch
          %426 = sbr.rel (%p424) target = $region64
        $region63: #{linear_masked_coupling_forward.1} parent=11 // pred_region
          _
        $region64: #{linear_masked_coupling_forward.1} parent=11 // pred_fallthru
          _
      $region12: #{linear_masked_coupling_forward.1} parent=5 // pred_fallthru
        _
      %p427 = scmp.lt.s32.totalorder %s22, 2
      // Predicated region
      $region65: #{linear_masked_coupling_forward.1} parent=5 // pred_check
        %p428 = pneg %p427
      $region66: #{linear_masked_coupling_forward.1} parent=5 // pred_check_branch
        %430 = sbr.rel (%p428) target = $region68
      $region67: #{linear_masked_coupling_forward.1} parent=5 // pred_region
        // Predicated region
        $region69: #{linear_masked_coupling_forward.1} parent=67 // pred_check
          %p431 = pneg %p42
        $region70: #{linear_masked_coupling_forward.1} parent=67 // pred_check_branch
          %433 = sbr.rel (%p431) target = $region72
        $region71: #{linear_masked_coupling_forward.1} parent=67 // pred_region
          %s434 = smul.u32 2, %s22
          %s435 = ssub.s32 3, %s434
          %p436 = scmp.lt.s32.totalorder %s435, 2
          %s437 = scalar_select %p436, %s435, 2
          %s438 = smul.u32 8, %s437
          %p439 = scmp.lt.s32.totalorder %s434, 2
          %s440 = scalar_select %p439, %s434, 2
          %s441 = smul.addr %s440, 8
          %s442 = scalar_lea.vmem %s0, %s441
          %s443 = smul.u32 2, %s22
          %s444 = ssub.s32 3, %s443
          %p445 = scmp.lt.s32.totalorder %s444, 2
          %s446 = scalar_select %p445, %s444, 2
          %s447 = smul.u32 8, %s446
        $region72: #{linear_masked_coupling_forward.1} parent=67 // pred_fallthru
          _
      $region68: #{linear_masked_coupling_forward.1} parent=5 // pred_fallthru
        _
      %p448 = scmp.le.s32.totalorder 1, %s22
      %p449 = scmp.lt.s32.totalorder %s22, 3
      %p450 = pnand %p448, %p449
      %p451 = pneg %p450
      // Predicated region
      $region73: #{linear_masked_coupling_forward.1} parent=5 // pred_check
        _
      $region74: #{linear_masked_coupling_forward.1} parent=5 // pred_check_branch
        %453 = sbr.rel (%p450) target = $region76
      $region75: #{linear_masked_coupling_forward.1} parent=5 // pred_region
        %s454 = ssub.s32 %s22, 1
        %s455 = smul.u32 2, %s27
        %s456 = ssub.s32 3, %s455
        %p457 = scmp.lt.s32.totalorder %s456, 2
        %s458 = scalar_select %p457, %s456, 2
        %s459 = smul.u32 8, %s458
        %p460 = scmp.lt.s32.totalorder %s455, 2
        %s461 = scalar_select %p460, %s455, 2
        %s462 = smul.addr %s461, 8
        %s463 = scalar_lea.vmem %s0, %s462
        %p464 = pneg %p48
        %p465 = pneg %p45
        %p466 = pneg %p69
        %p467 = pneg %p66
        %p468 = pneg %p90
        %p469 = pneg %p87
        %p470 = pneg %p111
        %p471 = pneg %p108
        %p472 = pneg %p132
        %p473 = pneg %p129
        %p474 = pneg %p153
        %p475 = pneg %p150
        %p476 = pneg %p174
        %p477 = pneg %p171
        %p478 = pneg %p195
        %p479 = pneg %p192
        %p480 = pneg %p216
        %p481 = pneg %p213
        %p482 = pneg %p237
        %p483 = pneg %p234
        %p484 = pneg %p258
        %p485 = pneg %p255
        %p486 = pneg %p279
        %p487 = pneg %p276
        %p488 = pneg %p300
        %p489 = pneg %p297
        %p490 = pneg %p321
        %p491 = pneg %p318
        %p492 = pneg %p347
        %p493 = pneg %p344
        %s494 = sand.u32 %s334, 1
        %s495 = sand.u32 %s334, 1
        %s496 = smul.addr %s495, 16
        %s497 = scalar_lea.vmem [#allocation2], %s496
        %p498 = pneg %p373
        %p499 = pneg %p370
        %s500 = sand.u32 %s360, 1
        %s501 = sand.u32 %s360, 1
        %s502 = smul.addr %s501, 16
        %s503 = scalar_lea.vmem [#allocation3], %s502
        %s504 = smul.u32 2, %s27
        %s505 = ssub.s32 3, %s504
        %p506 = scmp.lt.s32.totalorder %s505, 2
        %s507 = scalar_select %p506, %s505, 2
        %s508 = smul.u32 8, %s507
        %p509 = scmp.lt.s32.totalorder %s504, 2
        %s510 = scalar_select %p509, %s504, 2
        %s511 = smul.addr %s510, 8
        %s512 = scalar_lea.vmem %s0, %s511
        %s513 = smul.u32 2, %s27
        %s514 = ssub.s32 3, %s513
        %p515 = scmp.lt.s32.totalorder %s514, 2
        %s516 = scalar_select %p515, %s514, 2
        %s517 = smul.u32 8, %s516
        %s518 = smul.u32 2, %s27
        %s519 = ssub.s32 3, %s518
        %p520 = scmp.lt.s32.totalorder %s519, 2
        %s521 = scalar_select %p520, %s519, 2
        %s522 = smul.u32 8, %s521
        %s523 = smul.u32 2, %s27
        %s524 = ssub.s32 3, %s523
        %p525 = scmp.lt.s32.totalorder %s524, 2
        %s526 = scalar_select %p525, %s524, 2
        %s527 = smul.u32 8, %s526
        %v528 = vld [vmem:[%s512] sm:$0xff]
        %v529 = vld [vmem:[%s512 + $0x8] sm:$0xff]
        %v530 = vld [vmem:[%s1] sm:$0x1]
        %v532 = vperm.slane %v530, 0
        %v534 = vmul.f32 %v528, %v532
        %v535 = vmul.f32 %v529, %v532
        %v536 = vld [vmem:[%s2] sm:$0xff]
        %v537 = vld [vmem:[%s2 + $0x8] sm:$0xff]
        %v538 = vld [vmem:[%s2 + $0x10] sm:$0xff]
        %v539 = vld [vmem:[%s2 + $0x18] sm:$0xff]
        %v540 = vld [vmem:[%s2 + $0x20] sm:$0xff]
        %v541 = vld [vmem:[%s2 + $0x28] sm:$0xff]
        %v542 = vld [vmem:[%s2 + $0x30] sm:$0xff]
        %v543 = vld [vmem:[%s2 + $0x38] sm:$0xff]
        %v544 = vld [vmem:[%s2 + $0x40] sm:$0xff]
        %v545 = vld [vmem:[%s2 + $0x48] sm:$0xff]
        %v546 = vld [vmem:[%s2 + $0x50] sm:$0xff]
        %v547 = vld [vmem:[%s2 + $0x58] sm:$0xff]
        %v548 = vld [vmem:[%s2 + $0x60] sm:$0xff]
        %v549 = vld [vmem:[%s2 + $0x68] sm:$0xff]
        %v550 = vld [vmem:[%s2 + $0x70] sm:$0xff]
        %v551 = vld [vmem:[%s2 + $0x78] sm:$0xff]
        %v552 = vld [vmem:[%s8] sm:$0x1]
        %v554 = vperm.slane %v552, 0
        %556 = vmatpush.msra.mxu0 %v551
        %557 = vmatpush.msra.mxu0 %v550
        %558 = vmatpush.msra.mxu0 %v549
        %559 = vmatpush.msra.mxu0 %v548
        %560 = vmatpush.msra.mxu0 %v547
        %561 = vmatpush.msra.mxu0 %v546
        %562 = vmatpush.msra.mxu0 %v545
        %563 = vmatpush.msra.mxu0 %v544
        %564 = vmatpush.msra.mxu0 %v543
        %565 = vmatpush.msra.mxu0 %v542
        %566 = vmatpush.msra.mxu0 %v541
        %567 = vmatpush.msra.mxu0 %v540
        %568 = vmatpush.msra.mxu0 %v539
        %569 = vmatpush.msra.mxu0 %v538
        %570 = vmatpush.msra.mxu0 %v537
        %571 = vmatpush.msra.mxu0 %v536
        %572 = vmatmul.f32.gmra.mxu0 %v534
        %v573 = vpop.f32.mrf.mxu0
        %v574 = vadd.f32 %v554, %v573
        %575 = vmatmul.f32.gmra.mxu0 %v535
        %v576 = vpop.f32.mrf.mxu0
        %v577 = vadd.f32 %v554, %v576
        %578 = vdwg.mxu0
        %v579 = vld [vmem:[%s5] sm:$0xff]
        %v580 = vld [vmem:[%s5 + $0x8] sm:$0xff]
        %v581 = vld [vmem:[%s5 + $0x10] sm:$0xff]
        %v582 = vld [vmem:[%s5 + $0x18] sm:$0xff]
        %v583 = vld [vmem:[%s5 + $0x20] sm:$0xff]
        %v584 = vld [vmem:[%s5 + $0x28] sm:$0xff]
        %v585 = vld [vmem:[%s5 + $0x30] sm:$0xff]
        %v586 = vld [vmem:[%s5 + $0x38] sm:$0xff]
        %v587 = vld [vmem:[%s5 + $0x40] sm:$0xff]
        %v588 = vld [vmem:[%s5 + $0x48] sm:$0xff]
        %v589 = vld [vmem:[%s5 + $0x50] sm:$0xff]
        %v590 = vld [vmem:[%s5 + $0x58] sm:$0xff]
        %v591 = vld [vmem:[%s5 + $0x60] sm:$0xff]
        %v592 = vld [vmem:[%s5 + $0x68] sm:$0xff]
        %v593 = vld [vmem:[%s5 + $0x70] sm:$0xff]
        %v594 = vld [vmem:[%s5 + $0x78] sm:$0xff]
        %v595 = vld [vmem:[%s11] sm:$0x1]
        %v597 = vperm.slane %v595, 0
        %599 = vmatpush.msra.mxu0 %v594
        %600 = vmatpush.msra.mxu0 %v593
        %601 = vmatpush.msra.mxu0 %v592
        %602 = vmatpush.msra.mxu0 %v591
        %603 = vmatpush.msra.mxu0 %v590
        %604 = vmatpush.msra.mxu0 %v589
        %605 = vmatpush.msra.mxu0 %v588
        %606 = vmatpush.msra.mxu0 %v587
        %607 = vmatpush.msra.mxu0 %v586
        %608 = vmatpush.msra.mxu0 %v585
        %609 = vmatpush.msra.mxu0 %v584
        %610 = vmatpush.msra.mxu0 %v583
        %611 = vmatpush.msra.mxu0 %v582
        %612 = vmatpush.msra.mxu0 %v581
        %613 = vmatpush.msra.mxu0 %v580
        %614 = vmatpush.msra.mxu0 %v579
        %615 = vmatmul.f32.gmra.mxu0 %v534
        %v616 = vpop.f32.mrf.mxu0
        %v617 = vadd.f32 %v597, %v616
        %618 = vmatmul.f32.gmra.mxu0 %v535
        %v619 = vpop.f32.mrf.mxu0
        %v620 = vadd.f32 %v597, %v619
        %621 = vdwg.mxu0
        %v622 = vtanh.pop %v574
        %v623 = vtanh.pop %v577
        %v624 = vmax.f32 %v617, 0.0
        %v625 = vmax.f32 %v620, 0.0
        %v626 = vld [vmem:[%s3] sm:$0xff]
        %v627 = vld [vmem:[%s3 + $0x8] sm:$0xff]
        %v628 = vld [vmem:[%s3 + $0x10] sm:$0xff]
        %v629 = vld [vmem:[%s3 + $0x18] sm:$0xff]
        %v630 = vld [vmem:[%s9] sm:$0x1]
        %v632 = vperm.slane %v630, 0
        %vm634 = vcmask 261120
        %v636 = vsel %vm634, %v622, 0
        %v639 = vsel %vm634, %v623, 0
        %641 = vmatpush.msra.mxu0 0.0
        %642 = vmatpush.msra.mxu0 0.0
        %643 = vmatpush.msra.mxu0 0.0
        %644 = vmatpush.msra.mxu0 0.0
        %645 = vmatpush.msra.mxu0 0.0
        %646 = vmatpush.msra.mxu0 0.0
        %647 = vmatpush.msra.mxu0 0.0
        %648 = vmatpush.msra.mxu0 0.0
        %649 = vmatpush.msra.mxu0 0.0
        %650 = vmatpush.msra.mxu0 0.0
        %651 = vmatpush.msra.mxu0 0.0
        %652 = vmatpush.msra.mxu0 0.0
        %653 = vmatpush.msra.mxu0 %v629
        %654 = vmatpush.msra.mxu0 %v628
        %655 = vmatpush.msra.mxu0 %v627
        %656 = vmatpush.msra.mxu0 %v626
        %657 = vmatmul.f32.gmra.mxu0 %v636
        %v658 = vpop.f32.mrf.mxu0
        %v659 = vadd.f32 %v632, %v658
        %660 = vmatmul.f32.gmra.mxu0 %v639
        %v661 = vpop.f32.mrf.mxu0
        %v662 = vadd.f32 %v632, %v661
        %663 = vdwg.mxu0
        %v664 = vld [vmem:[%s6] sm:$0xff]
        %v665 = vld [vmem:[%s6 + $0x8] sm:$0xff]
        %v666 = vld [vmem:[%s6 + $0x10] sm:$0xff]
        %v667 = vld [vmem:[%s6 + $0x18] sm:$0xff]
        %v668 = vld [vmem:[%s12] sm:$0x1]
        %v670 = vperm.slane %v668, 0
        %v673 = vsel %vm634, %v624, 0
        %v676 = vsel %vm634, %v625, 0
        %678 = vmatpush.msra.mxu0 0.0
        %679 = vmatpush.msra.mxu0 0.0
        %680 = vmatpush.msra.mxu0 0.0
        %681 = vmatpush.msra.mxu0 0.0
        %682 = vmatpush.msra.mxu0 0.0
        %683 = vmatpush.msra.mxu0 0.0
        %684 = vmatpush.msra.mxu0 0.0
        %685 = vmatpush.msra.mxu0 0.0
        %686 = vmatpush.msra.mxu0 0.0
        %687 = vmatpush.msra.mxu0 0.0
        %688 = vmatpush.msra.mxu0 0.0
        %689 = vmatpush.msra.mxu0 0.0
        %690 = vmatpush.msra.mxu0 %v667
        %691 = vmatpush.msra.mxu0 %v666
        %692 = vmatpush.msra.mxu0 %v665
        %693 = vmatpush.msra.mxu0 %v664
        %694 = vmatmul.f32.gmra.mxu0 %v673
        %v695 = vpop.f32.mrf.mxu0
        %v696 = vadd.f32 %v670, %v695
        %697 = vmatmul.f32.gmra.mxu0 %v676
        %v698 = vpop.f32.mrf.mxu0
        %v699 = vadd.f32 %v670, %v698
        %700 = vdwg.mxu0
        %v701 = vtanh.pop %v659
        %v702 = vtanh.pop %v662
        %v703 = vmax.f32 %v696, 0.0
        %v704 = vmax.f32 %v699, 0.0
        %v705 = vld [vmem:[%s4] sm:$0xff]
        %v706 = vld [vmem:[%s4 + $0x8] sm:$0xff]
        %v707 = vld [vmem:[%s4 + $0x10] sm:$0xff]
        %v708 = vld [vmem:[%s4 + $0x18] sm:$0xff]
        %v709 = vld [vmem:[%s10] sm:$0x1]
        %v711 = vperm.slane %v709, 0
        %v714 = vsel %vm634, %v701, 0
        %v717 = vsel %vm634, %v702, 0
        %719 = vmatpush.msra.mxu0 0.0
        %720 = vmatpush.msra.mxu0 0.0
        %721 = vmatpush.msra.mxu0 0.0
        %722 = vmatpush.msra.mxu0 0.0
        %723 = vmatpush.msra.mxu0 0.0
        %724 = vmatpush.msra.mxu0 0.0
        %725 = vmatpush.msra.mxu0 0.0
        %726 = vmatpush.msra.mxu0 0.0
        %727 = vmatpush.msra.mxu0 0.0
        %728 = vmatpush.msra.mxu0 0.0
        %729 = vmatpush.msra.mxu0 0.0
        %730 = vmatpush.msra.mxu0 0.0
        %731 = vmatpush.msra.mxu0 %v708
        %732 = vmatpush.msra.mxu0 %v707
        %733 = vmatpush.msra.mxu0 %v706
        %734 = vmatpush.msra.mxu0 %v705
        %735 = vmatmul.f32.gmra.mxu0 %v714
        %v736 = vpop.f32.mrf.mxu0
        %v737 = vadd.f32 %v711, %v736
        %738 = vmatmul.f32.gmra.mxu0 %v717
        %v739 = vpop.f32.mrf.mxu0
        %v740 = vadd.f32 %v711, %v739
        %741 = vdwg.mxu0
        %v742 = vld [vmem:[%s7] sm:$0xff]
        %v743 = vld [vmem:[%s7 + $0x8] sm:$0xff]
        %v744 = vld [vmem:[%s7 + $0x10] sm:$0xff]
        %v745 = vld [vmem:[%s7 + $0x18] sm:$0xff]
        %v746 = vld [vmem:[%s13] sm:$0x1]
        %v748 = vperm.slane %v746, 0
        %v751 = vsel %vm634, %v703, 0
        %v754 = vsel %vm634, %v704, 0
        %756 = vmatpush.msra.mxu0 0.0
        %757 = vmatpush.msra.mxu0 0.0
        %758 = vmatpush.msra.mxu0 0.0
        %759 = vmatpush.msra.mxu0 0.0
        %760 = vmatpush.msra.mxu0 0.0
        %761 = vmatpush.msra.mxu0 0.0
        %762 = vmatpush.msra.mxu0 0.0
        %763 = vmatpush.msra.mxu0 0.0
        %764 = vmatpush.msra.mxu0 0.0
        %765 = vmatpush.msra.mxu0 0.0
        %766 = vmatpush.msra.mxu0 0.0
        %767 = vmatpush.msra.mxu0 0.0
        %768 = vmatpush.msra.mxu0 %v745
        %769 = vmatpush.msra.mxu0 %v744
        %770 = vmatpush.msra.mxu0 %v743
        %771 = vmatpush.msra.mxu0 %v742
        %772 = vmatmul.f32.gmra.mxu0 %v751
        %v773 = vpop.f32.mrf.mxu0
        %v774 = vadd.f32 %v748, %v773
        %775 = vmatmul.f32.gmra.mxu0 %v754
        %v776 = vpop.f32.mrf.mxu0
        %v777 = vadd.f32 %v748, %v776
        %778 = vdwg.mxu0
        %v779 = vsub.f32 1.0, %v530
        %v780 = vsub.f32 %v528, %v774
        %v781 = vsub.f32 %v529, %v777
        %v783 = vperm.slane %v779, 0
        %v785 = vmul.f32 %v783, %v780
        %v786 = vmul.f32 %v783, %v781
        %v787 = vsub.f32 0.0, %v737
        %v788 = vsub.f32 0.0, %v740
        %v789 = vmul.f32 %v787, 1.442695
        %v790 = vpow.pop %v789
        %v791 = vmul.f32 %v788, 1.442695
        %v792 = vpow.pop %v791
        %v793 = vmul.f32 %v785, %v790
        %v794 = vmul.f32 %v786, %v792
        %v795 = vadd.f32 %v534, %v793
        %v796 = vadd.f32 %v535, %v794
        %797 = vst [vmem:[%s497] sm:$0xff] %v795
        %798 = vst [vmem:[%s497 + $0x8] sm:$0xff] %v796
        %v799 = vsub.f32 0.0, %v779
        %v801 = vperm.slane %v799, 0
        %v803 = vmul.f32 %v801, %v737
        %v804 = vmul.f32 %v801, %v740
        %805 = vst [vmem:[%s503] sm:$0xff] %v803
        %806 = vst [vmem:[%s503 + $0x8] sm:$0xff] %v804
        %s807 = sand.u32 %s334, 1
        %s808 = sand.u32 %s334, 1
        %s809 = smul.addr %s808, 16
        %s810 = scalar_lea.vmem [#allocation2], %s809
        %s811 = sand.u32 %s360, 1
        %s812 = sand.u32 %s360, 1
        %s813 = smul.addr %s812, 16
        %s814 = scalar_lea.vmem [#allocation3], %s813
        // Predicated region
        $region77: #{linear_masked_coupling_forward.1} parent=75 // pred_check
          %p815 = pneg %p344
        $region78: #{linear_masked_coupling_forward.1} parent=75 // pred_check_branch
          %817 = sbr.rel (%p815) target = $region80
        $region79: #{linear_masked_coupling_forward.1} parent=75 // pred_region
          %s818 = smul.u32 2, %s27
          %s819 = ssub.s32 3, %s818
          %p820 = scmp.lt.s32.totalorder %s819, 2
          %s821 = scalar_select %p820, %s819, 2
          %s822 = smul.u32 8, %s821
          %p823 = scmp.ne.s32.totalorder 0, %s822
          %s824 = smul.addr %s818, 8
          %s825 = scalar_lea.vmem %s14, %s824
          // Predicated region
          $region81: #{linear_masked_coupling_forward.1} parent=79 // pred_check
            %p826 = pneg %p823
          $region82: #{linear_masked_coupling_forward.1} parent=79 // pred_check_branch
            %828 = sbr.rel (%p826) target = $region84
          $region83: #{linear_masked_coupling_forward.1} parent=79 // pred_region
            // Predicated region
            $region85: #{linear_masked_coupling_forward.1} parent=83 // pred_check
              _
            $region86: #{linear_masked_coupling_forward.1} parent=83 // pred_check_branch
              %830 = sbr.rel (0) target = $region88
            $region87: #{linear_masked_coupling_forward.1} parent=83 // pred_region
              // Predicated region
              $region107: #{linear_masked_coupling_forward.1} parent=87 // pred_check
                _
              $region108: #{linear_masked_coupling_forward.1} parent=87 // pred_check_branch
                %882 = sbr.rel (0) target = $region110
              $region109: #{linear_masked_coupling_forward.1} parent=87 // pred_region
                %s883 = sshrl.u32 %s821, 1
                // While loop
                $region111: #{linear_masked_coupling_forward.1} parent=109 // loop_pre_header
                  _
                $region112: #{linear_masked_coupling_forward.1} parent=109 // loop_header
                  %s885 = sphi 0, %s887
                  %p886 = scmp.ge.s32.totalorder %s885, %s883
                  %s890 = sphi 0, %s899
                  %s891 = sphi %s810, %s902
                  %s892 = sphi %s825, %s903
                $region113: #{linear_masked_coupling_forward.1} parent=109 // loop_header_branch
                  %889 = sbr.rel (%p886) target = $region117
                $region114: #{linear_masked_coupling_forward.1} parent=109 // loop_body
                  %v893 = vld [vmem:[%s891] sm:$0xff]
                  %894 = vst [vmem:[%s892] sm:$0xff] %v893
                  %v895 = vld [vmem:[%s891 + $0x8] sm:$0xff]
                  %896 = vst [vmem:[%s892 + $0x8] sm:$0xff] %v895
                  %s897 = sadd.s32 1, %s890
                  %p898 = scmp.ge.s32.totalorder %s897, %s883
                  %s899 = scalar_select %p898, 0, %s897
                  %s900 = smul.u32 %s899, 16
                  %s901 = smul.u32 %s899, 16
                  %s902 = scalar_lea.vmem %s810, %s900 [#allocation2]
                  %s903 = scalar_lea.vmem %s825, %s901
                $region115: #{linear_masked_coupling_forward.1} parent=109 // loop_footer
                  %s887 = sadd.s32 %s885, 1
                $region116: #{linear_masked_coupling_forward.1} parent=109 // loop_footer_branch
                  %884 = sbr.rel target = $region112
                $region117: #{linear_masked_coupling_forward.1} parent=109 // loop_exit
                  _
                %s904 = sshrl.u32 %s821, 1
                %s905 = sand.u32 %s821, 1
                %s906 = smul.u32 %s904, 2
                %s907 = smul.u32 8, %s906
                %s908 = scalar_lea.vmem %s810, %s907 [#allocation2]
                %s909 = smul.u32 8, %s906
                %s910 = scalar_lea.vmem %s825, %s909
                // While loop
                $region118: #{linear_masked_coupling_forward.1} parent=109 // loop_pre_header
                  _
                $region119: #{linear_masked_coupling_forward.1} parent=109 // loop_header
                  %s912 = sphi 0, %s914
                  %p913 = scmp.ge.s32.totalorder %s912, %s905
                  %s917 = sphi 0, %s924
                  %s918 = sphi %s908, %s927
                  %s919 = sphi %s910, %s928
                $region120: #{linear_masked_coupling_forward.1} parent=109 // loop_header_branch
                  %916 = sbr.rel (%p913) target = $region124
                $region121: #{linear_masked_coupling_forward.1} parent=109 // loop_body
                  %v920 = vld [vmem:[%s918] sm:$0xff]
                  %921 = vst [vmem:[%s919] sm:$0xff] %v920
                  %s922 = sadd.s32 1, %s917
                  %p923 = scmp.ge.s32.totalorder %s922, %s905
                  %s924 = scalar_select %p923, 0, %s922
                  %s925 = smul.u32 %s924, 8
                  %s926 = smul.u32 %s924, 8
                  %s927 = scalar_lea.vmem %s908, %s925 [#allocation2]
                  %s928 = scalar_lea.vmem %s910, %s926
                $region122: #{linear_masked_coupling_forward.1} parent=109 // loop_footer
                  %s914 = sadd.s32 %s912, 1
                $region123: #{linear_masked_coupling_forward.1} parent=109 // loop_footer_branch
                  %911 = sbr.rel target = $region119
                $region124: #{linear_masked_coupling_forward.1} parent=109 // loop_exit
                  _
              $region110: #{linear_masked_coupling_forward.1} parent=87 // pred_fallthru
                _
              // Predicated region
              $region125: #{linear_masked_coupling_forward.1} parent=87 // pred_check
                _
              $region126: #{linear_masked_coupling_forward.1} parent=87 // pred_check_branch
                %930 = sbr.rel target = $region128
              $region127: #{linear_masked_coupling_forward.1} parent=87 // pred_region
                _
              $region128: #{linear_masked_coupling_forward.1} parent=87 // pred_fallthru
                _
            $region88: #{linear_masked_coupling_forward.1} parent=83 // pred_fallthru
              _
            // Predicated region
            $region89: #{linear_masked_coupling_forward.1} parent=83 // pred_check
              _
            $region90: #{linear_masked_coupling_forward.1} parent=83 // pred_check_branch
              %832 = sbr.rel target = $region92
            $region91: #{linear_masked_coupling_forward.1} parent=83 // pred_region
              %s834 = ssub.s32 256, 1
              %s835 = sshrl.u32 %s821, 1
              // While loop
              $region93: #{linear_masked_coupling_forward.1} parent=91 // loop_pre_header
                _
              $region94: #{linear_masked_coupling_forward.1} parent=91 // loop_header
                %s837 = sphi 0, %s839
                %p838 = scmp.ge.s32.totalorder %s837, %s835
                %s842 = sphi 0, %s851
                %s843 = sphi %s810, %s854
                %s844 = sphi %s825, %s855
              $region95: #{linear_masked_coupling_forward.1} parent=91 // loop_header_branch
                %841 = sbr.rel (%p838) target = $region99
              $region96: #{linear_masked_coupling_forward.1} parent=91 // loop_body
                %v845 = vld [vmem:[%s843] sm:%s834]
                %846 = vst [vmem:[%s844] sm:%s834] %v845
                %v847 = vld [vmem:[%s843 + $0x8] sm:%s834]
                %848 = vst [vmem:[%s844 + $0x8] sm:%s834] %v847
                %s849 = sadd.s32 1, %s842
                %p850 = scmp.ge.s32.totalorder %s849, %s835
                %s851 = scalar_select %p850, 0, %s849
                %s852 = smul.u32 %s851, 16
                %s853 = smul.u32 %s851, 16
                %s854 = scalar_lea.vmem %s810, %s852 [#allocation2]
                %s855 = scalar_lea.vmem %s825, %s853
              $region97: #{linear_masked_coupling_forward.1} parent=91 // loop_footer
                %s839 = sadd.s32 %s837, 1
              $region98: #{linear_masked_coupling_forward.1} parent=91 // loop_footer_branch
                %836 = sbr.rel target = $region94
              $region99: #{linear_masked_coupling_forward.1} parent=91 // loop_exit
                _
              %s856 = sshrl.u32 %s821, 1
              %s857 = sand.u32 %s821, 1
              %s858 = smul.u32 %s856, 2
              %s859 = smul.u32 8, %s858
              %s860 = scalar_lea.vmem %s810, %s859 [#allocation2]
              %s861 = smul.u32 8, %s858
              %s862 = scalar_lea.vmem %s825, %s861
              // While loop
              $region100: #{linear_masked_coupling_forward.1} parent=91 // loop_pre_header
                _
              $region101: #{linear_masked_coupling_forward.1} parent=91 // loop_header
                %s864 = sphi 0, %s866
                %p865 = scmp.ge.s32.totalorder %s864, %s857
                %s869 = sphi 0, %s876
                %s870 = sphi %s860, %s879
                %s871 = sphi %s862, %s880
              $region102: #{linear_masked_coupling_forward.1} parent=91 // loop_header_branch
                %868 = sbr.rel (%p865) target = $region106
              $region103: #{linear_masked_coupling_forward.1} parent=91 // loop_body
                %v872 = vld [vmem:[%s870] sm:%s834]
                %873 = vst [vmem:[%s871] sm:%s834] %v872
                %s874 = sadd.s32 1, %s869
                %p875 = scmp.ge.s32.totalorder %s874, %s857
                %s876 = scalar_select %p875, 0, %s874
                %s877 = smul.u32 %s876, 8
                %s878 = smul.u32 %s876, 8
                %s879 = scalar_lea.vmem %s860, %s877 [#allocation2]
                %s880 = scalar_lea.vmem %s862, %s878
              $region104: #{linear_masked_coupling_forward.1} parent=91 // loop_footer
                %s866 = sadd.s32 %s864, 1
              $region105: #{linear_masked_coupling_forward.1} parent=91 // loop_footer_branch
                %863 = sbr.rel target = $region101
              $region106: #{linear_masked_coupling_forward.1} parent=91 // loop_exit
                _
            $region92: #{linear_masked_coupling_forward.1} parent=83 // pred_fallthru
              _
          $region84: #{linear_masked_coupling_forward.1} parent=79 // pred_fallthru
            _
          %931 = vnop
        $region80: #{linear_masked_coupling_forward.1} parent=75 // pred_fallthru
          _
        // Predicated region
        $region129: #{linear_masked_coupling_forward.1} parent=75 // pred_check
          %p932 = pneg %p370
        $region130: #{linear_masked_coupling_forward.1} parent=75 // pred_check_branch
          %934 = sbr.rel (%p932) target = $region132
        $region131: #{linear_masked_coupling_forward.1} parent=75 // pred_region
          %s935 = smul.u32 2, %s27
          %s936 = ssub.s32 3, %s935
          %p937 = scmp.lt.s32.totalorder %s936, 2
          %s938 = scalar_select %p937, %s936, 2
          %s939 = smul.u32 8, %s938
          %p940 = scmp.ne.s32.totalorder 0, %s939
          %s941 = smul.addr %s935, 8
          %s942 = scalar_lea.vmem %s15, %s941
          // Predicated region
          $region133: #{linear_masked_coupling_forward.1} parent=131 // pred_check
            %p943 = pneg %p940
          $region134: #{linear_masked_coupling_forward.1} parent=131 // pred_check_branch
            %945 = sbr.rel (%p943) target = $region136
          $region135: #{linear_masked_coupling_forward.1} parent=131 // pred_region
            // Predicated region
            $region137: #{linear_masked_coupling_forward.1} parent=135 // pred_check
              _
            $region138: #{linear_masked_coupling_forward.1} parent=135 // pred_check_branch
              %947 = sbr.rel (0) target = $region140
            $region139: #{linear_masked_coupling_forward.1} parent=135 // pred_region
              // Predicated region
              $region159: #{linear_masked_coupling_forward.1} parent=139 // pred_check
                _
              $region160: #{linear_masked_coupling_forward.1} parent=139 // pred_check_branch
                %999 = sbr.rel (0) target = $region162
              $region161: #{linear_masked_coupling_forward.1} parent=139 // pred_region
                %s1000 = sshrl.u32 %s938, 1
                // While loop
                $region163: #{linear_masked_coupling_forward.1} parent=161 // loop_pre_header
                  _
                $region164: #{linear_masked_coupling_forward.1} parent=161 // loop_header
                  %s1002 = sphi 0, %s1004
                  %p1003 = scmp.ge.s32.totalorder %s1002, %s1000
                  %s1007 = sphi 0, %s1016
                  %s1008 = sphi %s814, %s1019
                  %s1009 = sphi %s942, %s1020
                $region165: #{linear_masked_coupling_forward.1} parent=161 // loop_header_branch
                  %1006 = sbr.rel (%p1003) target = $region169
                $region166: #{linear_masked_coupling_forward.1} parent=161 // loop_body
                  %v1010 = vld [vmem:[%s1008] sm:$0xff]
                  %1011 = vst [vmem:[%s1009] sm:$0xff] %v1010
                  %v1012 = vld [vmem:[%s1008 + $0x8] sm:$0xff]
                  %1013 = vst [vmem:[%s1009 + $0x8] sm:$0xff] %v1012
                  %s1014 = sadd.s32 1, %s1007
                  %p1015 = scmp.ge.s32.totalorder %s1014, %s1000
                  %s1016 = scalar_select %p1015, 0, %s1014
                  %s1017 = smul.u32 %s1016, 16
                  %s1018 = smul.u32 %s1016, 16
                  %s1019 = scalar_lea.vmem %s814, %s1017 [#allocation3]
                  %s1020 = scalar_lea.vmem %s942, %s1018
                $region167: #{linear_masked_coupling_forward.1} parent=161 // loop_footer
                  %s1004 = sadd.s32 %s1002, 1
                $region168: #{linear_masked_coupling_forward.1} parent=161 // loop_footer_branch
                  %1001 = sbr.rel target = $region164
                $region169: #{linear_masked_coupling_forward.1} parent=161 // loop_exit
                  _
                %s1021 = sshrl.u32 %s938, 1
                %s1022 = sand.u32 %s938, 1
                %s1023 = smul.u32 %s1021, 2
                %s1024 = smul.u32 8, %s1023
                %s1025 = scalar_lea.vmem %s814, %s1024 [#allocation3]
                %s1026 = smul.u32 8, %s1023
                %s1027 = scalar_lea.vmem %s942, %s1026
                // While loop
                $region170: #{linear_masked_coupling_forward.1} parent=161 // loop_pre_header
                  _
                $region171: #{linear_masked_coupling_forward.1} parent=161 // loop_header
                  %s1029 = sphi 0, %s1031
                  %p1030 = scmp.ge.s32.totalorder %s1029, %s1022
                  %s1034 = sphi 0, %s1041
                  %s1035 = sphi %s1025, %s1044
                  %s1036 = sphi %s1027, %s1045
                $region172: #{linear_masked_coupling_forward.1} parent=161 // loop_header_branch
                  %1033 = sbr.rel (%p1030) target = $region176
                $region173: #{linear_masked_coupling_forward.1} parent=161 // loop_body
                  %v1037 = vld [vmem:[%s1035] sm:$0xff]
                  %1038 = vst [vmem:[%s1036] sm:$0xff] %v1037
                  %s1039 = sadd.s32 1, %s1034
                  %p1040 = scmp.ge.s32.totalorder %s1039, %s1022
                  %s1041 = scalar_select %p1040, 0, %s1039
                  %s1042 = smul.u32 %s1041, 8
                  %s1043 = smul.u32 %s1041, 8
                  %s1044 = scalar_lea.vmem %s1025, %s1042 [#allocation3]
                  %s1045 = scalar_lea.vmem %s1027, %s1043
                $region174: #{linear_masked_coupling_forward.1} parent=161 // loop_footer
                  %s1031 = sadd.s32 %s1029, 1
                $region175: #{linear_masked_coupling_forward.1} parent=161 // loop_footer_branch
                  %1028 = sbr.rel target = $region171
                $region176: #{linear_masked_coupling_forward.1} parent=161 // loop_exit
                  _
              $region162: #{linear_masked_coupling_forward.1} parent=139 // pred_fallthru
                _
              // Predicated region
              $region177: #{linear_masked_coupling_forward.1} parent=139 // pred_check
                _
              $region178: #{linear_masked_coupling_forward.1} parent=139 // pred_check_branch
                %1047 = sbr.rel target = $region180
              $region179: #{linear_masked_coupling_forward.1} parent=139 // pred_region
                _
              $region180: #{linear_masked_coupling_forward.1} parent=139 // pred_fallthru
                _
            $region140: #{linear_masked_coupling_forward.1} parent=135 // pred_fallthru
              _
            // Predicated region
            $region141: #{linear_masked_coupling_forward.1} parent=135 // pred_check
              _
            $region142: #{linear_masked_coupling_forward.1} parent=135 // pred_check_branch
              %949 = sbr.rel target = $region144
            $region143: #{linear_masked_coupling_forward.1} parent=135 // pred_region
              %s951 = ssub.s32 256, 1
              %s952 = sshrl.u32 %s938, 1
              // While loop
              $region145: #{linear_masked_coupling_forward.1} parent=143 // loop_pre_header
                _
              $region146: #{linear_masked_coupling_forward.1} parent=143 // loop_header
                %s954 = sphi 0, %s956
                %p955 = scmp.ge.s32.totalorder %s954, %s952
                %s959 = sphi 0, %s968
                %s960 = sphi %s814, %s971
                %s961 = sphi %s942, %s972
              $region147: #{linear_masked_coupling_forward.1} parent=143 // loop_header_branch
                %958 = sbr.rel (%p955) target = $region151
              $region148: #{linear_masked_coupling_forward.1} parent=143 // loop_body
                %v962 = vld [vmem:[%s960] sm:%s951]
                %963 = vst [vmem:[%s961] sm:%s951] %v962
                %v964 = vld [vmem:[%s960 + $0x8] sm:%s951]
                %965 = vst [vmem:[%s961 + $0x8] sm:%s951] %v964
                %s966 = sadd.s32 1, %s959
                %p967 = scmp.ge.s32.totalorder %s966, %s952
                %s968 = scalar_select %p967, 0, %s966
                %s969 = smul.u32 %s968, 16
                %s970 = smul.u32 %s968, 16
                %s971 = scalar_lea.vmem %s814, %s969 [#allocation3]
                %s972 = scalar_lea.vmem %s942, %s970
              $region149: #{linear_masked_coupling_forward.1} parent=143 // loop_footer
                %s956 = sadd.s32 %s954, 1
              $region150: #{linear_masked_coupling_forward.1} parent=143 // loop_footer_branch
                %953 = sbr.rel target = $region146
              $region151: #{linear_masked_coupling_forward.1} parent=143 // loop_exit
                _
              %s973 = sshrl.u32 %s938, 1
              %s974 = sand.u32 %s938, 1
              %s975 = smul.u32 %s973, 2
              %s976 = smul.u32 8, %s975
              %s977 = scalar_lea.vmem %s814, %s976 [#allocation3]
              %s978 = smul.u32 8, %s975
              %s979 = scalar_lea.vmem %s942, %s978
              // While loop
              $region152: #{linear_masked_coupling_forward.1} parent=143 // loop_pre_header
                _
              $region153: #{linear_masked_coupling_forward.1} parent=143 // loop_header
                %s981 = sphi 0, %s983
                %p982 = scmp.ge.s32.totalorder %s981, %s974
                %s986 = sphi 0, %s993
                %s987 = sphi %s977, %s996
                %s988 = sphi %s979, %s997
              $region154: #{linear_masked_coupling_forward.1} parent=143 // loop_header_branch
                %985 = sbr.rel (%p982) target = $region158
              $region155: #{linear_masked_coupling_forward.1} parent=143 // loop_body
                %v989 = vld [vmem:[%s987] sm:%s951]
                %990 = vst [vmem:[%s988] sm:%s951] %v989
                %s991 = sadd.s32 1, %s986
                %p992 = scmp.ge.s32.totalorder %s991, %s974
                %s993 = scalar_select %p992, 0, %s991
                %s994 = smul.u32 %s993, 8
                %s995 = smul.u32 %s993, 8
                %s996 = scalar_lea.vmem %s977, %s994 [#allocation3]
                %s997 = scalar_lea.vmem %s979, %s995
              $region156: #{linear_masked_coupling_forward.1} parent=143 // loop_footer
                %s983 = sadd.s32 %s981, 1
              $region157: #{linear_masked_coupling_forward.1} parent=143 // loop_footer_branch
                %980 = sbr.rel target = $region153
              $region158: #{linear_masked_coupling_forward.1} parent=143 // loop_exit
                _
            $region144: #{linear_masked_coupling_forward.1} parent=135 // pred_fallthru
              _
          $region136: #{linear_masked_coupling_forward.1} parent=131 // pred_fallthru
            _
          %1048 = vnop
        $region132: #{linear_masked_coupling_forward.1} parent=75 // pred_fallthru
          _
      $region76: #{linear_masked_coupling_forward.1} parent=5 // pred_fallthru
        _
      %p1049 = scmp.le.s32.totalorder 2, %s22
      // Predicated region
      $region181: #{linear_masked_coupling_forward.1} parent=5 // pred_check
        %p1050 = pneg %p1049
      $region182: #{linear_masked_coupling_forward.1} parent=5 // pred_check_branch
        %1052 = sbr.rel (%p1050) target = $region184
      $region183: #{linear_masked_coupling_forward.1} parent=5 // pred_region
        %s1053 = ssub.s32 %s22, 2
        // Predicated region
        $region185: #{linear_masked_coupling_forward.1} parent=183 // pred_check
          %p1054 = pneg %p350
        $region186: #{linear_masked_coupling_forward.1} parent=183 // pred_check_branch
          %1056 = sbr.rel (%p1054) target = $region188
        $region187: #{linear_masked_coupling_forward.1} parent=183 // pred_region
          %s1057 = sand.u32 %s335, 1
          %s1058 = sand.u32 %s335, 1
          %s1059 = smul.addr %s1058, 16
          %s1060 = scalar_lea.vmem [#allocation2], %s1059
        $region188: #{linear_masked_coupling_forward.1} parent=183 // pred_fallthru
          _
        // Predicated region
        $region189: #{linear_masked_coupling_forward.1} parent=183 // pred_check
          %p1061 = pneg %p376
        $region190: #{linear_masked_coupling_forward.1} parent=183 // pred_check_branch
          %1063 = sbr.rel (%p1061) target = $region192
        $region191: #{linear_masked_coupling_forward.1} parent=183 // pred_region
          %s1064 = sand.u32 %s361, 1
          %s1065 = sand.u32 %s361, 1
          %s1066 = smul.addr %s1065, 16
          %s1067 = scalar_lea.vmem [#allocation3], %s1066
        $region192: #{linear_masked_coupling_forward.1} parent=183 // pred_fallthru
          _
      $region184: #{linear_masked_coupling_forward.1} parent=5 // pred_fallthru
        _
    $region6: #{linear_masked_coupling_forward.1} parent=1 // loop_footer
      %s26 = sadd.s32 1, %s22
    $region7: #{linear_masked_coupling_forward.1} parent=1 // loop_footer_branch
      %21 = sbr.rel target = $region3
    $region8: #{linear_masked_coupling_forward.1} parent=1 // loop_exit
      _

</llo_original>
